<compile_context>
chip_gen: v5e
topology: v5e:2x2
jax: 0.10.0
libtpu: 0.0.40
codegen_flags: <defaults>
</compile_context>

<pallas_src>
import functools

import jax
import jax.numpy as jnp
import numpy as np
from jax.experimental import pallas as pl
from jax.experimental.pallas import tpu as pltpu


def _dino_loss_kernel(temp_ref,          # scalar-prefetch: (1,) f32 teacher temp
                      student_ref,       # (cps*B, D) student crops of this step
                      teacher_ref,       # (2B, D) full teacher output (resident)
                      center_ref,        # (1, D) old center (resident)
                      loss_ref,          # out: (1, 1) total loss
                      new_center_ref,    # out: (1, D) updated center
                      nqs_ref,           # scratch: (B, D) f32, -(q0 + q1)
                      acc_ref,           # scratch: (1, 1) f32 running loss
                      *,
                      inv_student_temp,
                      center_momentum,
                      inv_n_loss_terms,
                      crops_per_step,
                      batch_per_crop,
                      c0_step, c0_slot,   # static: which (step, slot) is crop 0
                      c1_step, c1_slot):  # static: which (step, slot) is crop 1
    step = pl.program_id(0)
    num_steps = pl.num_programs(0)
    B = batch_per_crop
    inv_B = 1.0 / float(B)

    # --- step 0: init accumulator, center EMA, fused pre-negated teacher q ---
    @pl.when(step == 0)
    def _():
        acc_ref[...] = jnp.zeros_like(acc_ref)

        t_raw = teacher_ref[...].astype(jnp.float32)

        # update_center: EMA of the batch mean of the *raw* teacher outputs.
        batch_center = jnp.sum(t_raw, axis=0, keepdims=True) * (1.0 / t_raw.shape[0])
        new_center_ref[...] = (
            center_ref[...].astype(jnp.float32) * center_momentum
            + batch_center * (1.0 - center_momentum)
        ).astype(new_center_ref.dtype)

        # teacher softmax over both teacher crops, computed once; only the
        # fused, pre-negated sum -(q0 + q1) stays resident in VMEM.
        inv_temp = 1.0 / temp_ref[0]                       # scalar reciprocal
        t = (t_raw - center_ref[...].astype(jnp.float32)) * inv_temp
        t_max = jnp.max(t, axis=-1, keepdims=True)
        t_exp = jnp.exp(t - t_max)
        q = t_exp * pl.reciprocal(
            jnp.sum(t_exp, axis=-1, keepdims=True), approx=False)
        nqs_ref[...] = -(q[0:B, :] + q[B:2 * B, :])

    # --- diagonal correction helper (cold path, runs once per teacher crop) --
    def _diag_correction(row_lo, lsm_c):
        # Recompute one teacher-crop softmax (B, D) from the resident teacher
        # block; adds back +mean_b sum_d q_iq * lsm_v so the unconditional
        # fused term below nets to the diagonal-skipped CE.
        inv_temp = 1.0 / temp_ref[0]
        t = (teacher_ref[row_lo:row_lo + B, :].astype(jnp.float32)
             - center_ref[...].astype(jnp.float32)) * inv_temp
        t_max = jnp.max(t, axis=-1, keepdims=True)
        t_exp = jnp.exp(t - t_max)
        q = t_exp * pl.reciprocal(
            jnp.sum(t_exp, axis=-1, keepdims=True), approx=False)
        corr = jnp.sum(jnp.sum(q * lsm_c, axis=-1, keepdims=True),
                       axis=0, keepdims=True) * inv_B
        acc_ref[...] += corr

    # --- student log-softmax for every crop handled in this step (row-wise) --
    s = student_ref[...].astype(jnp.float32) * inv_student_temp
    s_max = jnp.max(s, axis=-1, keepdims=True)
    s_shift = s - s_max
    lse = jnp.log(jnp.sum(jnp.exp(s_shift), axis=-1, keepdims=True))
    log_sm = s_shift - lse                                   # (cps*B, D)

    nqs = nqs_ref[...]                                       # hoisted load

    # --- cross-entropy: branch-free fused term per crop + static corrections -
    for c in range(crops_per_step):
        lsm_c = log_sm[c * B:(c + 1) * B, :]                 # (B, D), static slice

        # fused term: sum_b sum_d -(q0+q1) * lsm ; no negate, no branch.
        term = jnp.sum(jnp.sum(nqs * lsm_c, axis=-1, keepdims=True),
                       axis=0, keepdims=True) * inv_B        # (1, 1)
        acc_ref[...] += term

        # diagonal corrections only at the (static) slot holding crops 0 / 1.
        if c == c0_slot:
            @pl.when(step == c0_step)
            def _(lsm_c=lsm_c):
                _diag_correction(0, lsm_c)                   # crop 0 vs teacher 0
        if c == c1_slot:
            @pl.when(step == c1_step)
            def _(lsm_c=lsm_c):
                _diag_correction(B, lsm_c)                   # crop 1 vs teacher 1

    # --- finalize: single write of the (1, 1) output --------------------------
    @pl.when(step == num_steps - 1)
    def _():
        loss_ref[...] = acc_ref[...] * inv_n_loss_terms


def dino_loss_pallas(student_output, teacher_output, center, temp,
                     *, ncrops, student_temp=0.1, center_momentum=0.9,
                     vmem_budget_bytes=None):
    """Returns (total_loss, new_center). Accepts f32 or bf16 student/teacher."""
    total_rows, out_dim = student_output.shape
    assert ncrops >= 2, "ncrops must be >= 2 (n_loss_terms would be 0)"
    assert total_rows % ncrops == 0
    B = total_rows // ncrops
    assert teacher_output.shape == (2 * B, out_dim)  # DINO uses 2 teacher crops
    n_loss_terms = 2 * (ncrops - 1)

    # --- generation-aware VMEM budget -----------------------------------------
    try:
        phys_vmem = int(getattr(pltpu.get_tpu_info(),
                                "vmem_capacity_bytes", 64 << 20))
    except Exception:  # not on TPU / API unavailable -> conservative v7x figure
        phys_vmem = 64 << 20
    if vmem_budget_bytes is None:
        vmem_budget_bytes = max(int(phys_vmem * 0.70), 16 << 20)

    in_itemsize = student_output.dtype.itemsize
    t_itemsize = teacher_output.dtype.itemsize
    # Resident: teacher block, center in/out, fused -(q0+q1) scratch (f32),
    # plus the step-0 f32 teacher-softmax temporaries.
    fixed_bytes = (2 * B * out_dim * t_itemsize
                   + 2 * out_dim * 4
                   + B * out_dim * 4
                   + 2 * (2 * B) * out_dim * 4)

    crops_per_step = 1
    for d in range(ncrops, 0, -1):
        if ncrops % d:
            continue
        if d != ncrops and (d * B) % 8 != 0:     # keep sublane-aligned blocks
            continue
        student_bytes = 2 * d * B * out_dim * in_itemsize   # double-buffered
        interm_bytes = 3 * d * B * out_dim * 4              # f32 log-softmax temps
        if fixed_bytes + student_bytes + interm_bytes <= vmem_budget_bytes:
            crops_per_step = d
            break
    num_steps = ncrops // crops_per_step

    est_bytes = (fixed_bytes
                 + 2 * crops_per_step * B * out_dim * in_itemsize
                 + 3 * crops_per_step * B * out_dim * 4)
    vmem_limit = None
    if est_bytes > (12 << 20):
        vmem_limit = min(max(int(est_bytes * 1.4) + (4 << 20), 32 << 20),
                         int(phys_vmem * 0.92))
        # TODO(synk): if est_bytes itself exceeds physical VMEM (very large
        # out_dim), a D-tiled two-pass kernel is required.

    c0_step, c0_slot = divmod(0, crops_per_step)
    c1_step, c1_slot = divmod(1, crops_per_step)

    kernel = functools.partial(
        _dino_loss_kernel,
        inv_student_temp=1.0 / float(student_temp),
        center_momentum=float(center_momentum),
        inv_n_loss_terms=1.0 / float(n_loss_terms),
        crops_per_step=crops_per_step,
        batch_per_crop=B,
        c0_step=c0_step, c0_slot=c0_slot,
        c1_step=c1_step, c1_slot=c1_slot,
    )

    temp_arr = jnp.asarray(temp, jnp.float32).reshape((1,))

    grid_spec = pltpu.PrefetchScalarGridSpec(
        num_scalar_prefetch=1,
        grid=(num_steps,),
        in_specs=[
            # student crops handled by this step (streamed)
            pl.BlockSpec((crops_per_step * B, out_dim),
                         lambda g, temp_ref: (g, 0)),
            # full teacher output (resident)
            pl.BlockSpec((2 * B, out_dim), lambda g, temp_ref: (0, 0)),
            # old center (resident)
            pl.BlockSpec((1, out_dim), lambda g, temp_ref: (0, 0)),
        ],
        out_specs=[
            pl.BlockSpec((1, 1), lambda g, temp_ref: (0, 0)),        # loss
            pl.BlockSpec((1, out_dim), lambda g, temp_ref: (0, 0)),  # new center
        ],
        scratch_shapes=[
            pltpu.VMEM((B, out_dim), jnp.float32),   # -(q0 + q1), pre-negated
            pltpu.VMEM((1, 1), jnp.float32),         # running loss
        ],
    )

    loss, new_center = pl.pallas_call(
        kernel,
        grid_spec=grid_spec,
        out_shape=(
            jax.ShapeDtypeStruct((1, 1), jnp.float32),
            jax.ShapeDtypeStruct((1, out_dim), jnp.float32),
        ),
        compiler_params=pltpu.CompilerParams(
            dimension_semantics=("arbitrary",),
            vmem_limit_bytes=vmem_limit),
    )(temp_arr, student_output, teacher_output, center)

    return loss[0, 0], new_center


def dino_loss_ref(student_output, teacher_output, center, temp,
                  *, ncrops, student_temp=0.1, center_momentum=0.9):
    s = student_output.astype(jnp.float32) / student_temp
    s_chunks = jnp.split(s, ncrops, axis=0)
    q = jax.nn.softmax(
        (teacher_output.astype(jnp.float32) - center) / temp, axis=-1)
    q_chunks = jnp.split(q, 2, axis=0)
    total, n = 0.0, 0
    for iq, qq in enumerate(q_chunks):
        for v in range(ncrops):
            if v == iq:
                continue
            loss = jnp.sum(-qq * jax.nn.log_softmax(s_chunks[v], axis=-1), axis=-1)
            total = total + loss.mean()
            n += 1
    total = total / n
    bc = (jnp.sum(teacher_output.astype(jnp.float32), axis=0, keepdims=True)
          / teacher_output.shape[0])
    new_center = center * center_momentum + bc * (1.0 - center_momentum)
    return total, new_center


if __name__ == "__main__":
    # Module hyperparameters (deterministic, in-script)
    out_dim = 128
    ncrops = 4
    warmup_teacher_temp = 0.04
    teacher_temp = 0.07
    warmup_teacher_temp_epochs = 3
    nepochs = 10
    student_temp = 0.1
    center_momentum = 0.9
    epoch = 2

    teacher_temp_schedule = np.concatenate((
        np.linspace(warmup_teacher_temp, teacher_temp, warmup_teacher_temp_epochs),
        np.ones(nepochs - warmup_teacher_temp_epochs) * teacher_temp,
    ))
    temp = float(teacher_temp_schedule[epoch])

    B = 8  # batch size per crop
    key = jax.random.PRNGKey(0)
    k1, k2 = jax.random.split(key)
    student_output = jax.random.normal(k1, (ncrops * B, out_dim), jnp.float32)
    teacher_output = jax.random.normal(k2, (2 * B, out_dim), jnp.float32)
    center = jnp.zeros((1, out_dim), jnp.float32)  # register_buffer init

    loss, new_center = dino_loss_pallas(
        student_output, teacher_output, center, temp,
        ncrops=ncrops, student_temp=student_temp, center_momentum=center_momentum)
    jax.block_until_ready((loss, new_center))

    loss_ref, center_ref_v = dino_loss_ref(
        student_output, teacher_output, center, temp,
        ncrops=ncrops, student_temp=student_temp, center_momentum=center_momentum)

    np.testing.assert_allclose(np.asarray(loss), np.asarray(loss_ref),
                               rtol=1e-5, atol=1e-5)
    np.testing.assert_allclose(np.asarray(new_center), np.asarray(center_ref_v),
                               rtol=1e-5, atol=1e-5)

    print("KERNEL_OK")
</pallas_src>

<mosaic_0001>
module attributes {stable_mosaic.version = 11 : i64} {
  func.func @_dino_loss_kernel(%arg0: i32, %arg1: memref<1xf32, #tpu.memory_space<smem>>, %arg2: memref<32x128xf32, #tpu.memory_space<vmem>>, %arg3: memref<16x128xf32, #tpu.memory_space<vmem>>, %arg4: memref<1x128xf32, #tpu.memory_space<vmem>>, %arg5: memref<1x1xf32, #tpu.memory_space<vmem>>, %arg6: memref<1x128xf32, #tpu.memory_space<vmem>>, %arg7: memref<8x128xf32, #tpu.memory_space<vmem>>, %arg8: memref<1x1xf32, #tpu.memory_space<vmem>>) attributes {dimension_semantics = [#tpu.dimension_semantics<arbitrary>], iteration_bounds = array<i64: 1>, scalar_prefetch = 1 : i64, scratch_operands = 2 : i64, tpu.core_type = #tpu.core_type<tc>, window_params = [{transform_indices = @transform_0, window_bounds = array<i64: 32, 128>}, {pipeline_mode = #tpu.pipeline_mode<synchronous>, transform_indices = @transform_1, window_bounds = array<i64: 16, 128>}, {pipeline_mode = #tpu.pipeline_mode<synchronous>, transform_indices = @transform_2, window_bounds = array<i64: 1, 128>}, {pipeline_mode = #tpu.pipeline_mode<synchronous>, transform_indices = @transform_3, window_bounds = array<i64: 1, 1>}, {pipeline_mode = #tpu.pipeline_mode<synchronous>, transform_indices = @transform_4, window_bounds = array<i64: 1, 128>}]} {
    %c0_i32 = arith.constant 0 : i32
    %0 = arith.cmpi eq, %arg0, %c0_i32 : i32
    %1 = arith.extui %0 : i1 to i32
    %c0_i32_0 = arith.constant 0 : i32
    %2 = arith.cmpi ne, %1, %c0_i32_0 : i32
    scf.if %2 {
      %cst_40 = arith.constant 0.000000e+00 : f32
      %70 = vector.broadcast %cst_40 : f32 to vector<1x1xf32>
      %c0_41 = arith.constant 0 : index
      %c0_42 = arith.constant 0 : index
      %71 = vector.load %arg8[%c0_41, %c0_42] : memref<1x1xf32, #tpu.memory_space<vmem>>, vector<1x1xf32>
      tpu.vector_store %arg8[%c0_41, %c0_42], %70 {strides = array<i32>} : memref<1x1xf32, #tpu.memory_space<vmem>>, vector<1x1xf32>,
      %c0_43 = arith.constant 0 : index
      %c0_44 = arith.constant 0 : index
      %72 = vector.load %arg3[%c0_43, %c0_44] : memref<16x128xf32, #tpu.memory_space<vmem>>, vector<16x128xf32>
      %cst_45 = arith.constant dense<0.000000e+00> : vector<128xf32>
      %73 = vector.multi_reduction <add>, %72, %cst_45 [0] : vector<16x128xf32> to vector<128xf32>
      %74 = vector.shape_cast %73 : vector<128xf32> to vector<1x128xf32>
      %cst_46 = arith.constant 6.250000e-02 : f32
      %75 = vector.broadcast %cst_46 : f32 to vector<1x128xf32>
      %76 = arith.mulf %74, %75 : vector<1x128xf32>
      %c0_47 = arith.constant 0 : index
      %c0_48 = arith.constant 0 : index
      %77 = vector.load %arg4[%c0_47, %c0_48] : memref<1x128xf32, #tpu.memory_space<vmem>>, vector<1x128xf32>
      %cst_49 = arith.constant 0.899999976 : f32
      %78 = vector.broadcast %cst_49 : f32 to vector<1x128xf32>
      %79 = arith.mulf %77, %78 : vector<1x128xf32>
      %cst_50 = arith.constant 1.000000e-01 : f32
      %80 = vector.broadcast %cst_50 : f32 to vector<1x128xf32>
      %81 = arith.mulf %76, %80 : vector<1x128xf32>
      %82 = arith.addf %79, %81 : vector<1x128xf32>
      %c0_51 = arith.constant 0 : index
      %c0_52 = arith.constant 0 : index
      %83 = vector.load %arg6[%c0_51, %c0_52] : memref<1x128xf32, #tpu.memory_space<vmem>>, vector<1x128xf32>
      tpu.vector_store %arg6[%c0_51, %c0_52], %82 {strides = array<i32>} : memref<1x128xf32, #tpu.memory_space<vmem>>, vector<1x128xf32>,
      %c0_53 = arith.constant 0 : index
      %84 = memref.load %arg1[%c0_53] : memref<1xf32, #tpu.memory_space<smem>>
      %cst_54 = arith.constant 1.000000e+00 : f32
      %85 = arith.divf %cst_54, %84 : f32
      %c0_55 = arith.constant 0 : index
      %c0_56 = arith.constant 0 : index
      %86 = vector.load %arg4[%c0_55, %c0_56] : memref<1x128xf32, #tpu.memory_space<vmem>>, vector<1x128xf32>
      %87 = vector.broadcast %86 : vector<1x128xf32> to vector<16x128xf32>
      %88 = arith.subf %72, %87 : vector<16x128xf32>
      %89 = vector.broadcast %85 : f32 to vector<16x128xf32>
      %90 = arith.mulf %88, %89 : vector<16x128xf32>
      %cst_57 = arith.constant dense<0xFF800000> : vector<16xf32>
      %91 = vector.multi_reduction <maximumf>, %90, %cst_57 [1] : vector<16x128xf32> to vector<16xf32>
      %92 = vector.shape_cast %91 : vector<16xf32> to vector<16x1xf32>
      %93 = vector.broadcast %92 : vector<16x1xf32> to vector<16x128xf32>
      %94 = arith.subf %90, %93 : vector<16x128xf32>
      %95 = math.exp %94 : vector<16x128xf32>
      %cst_58 = arith.constant dense<0.000000e+00> : vector<16xf32>
      %96 = vector.multi_reduction <add>, %95, %cst_58 [1] : vector<16x128xf32> to vector<16xf32>
      %97 = vector.shape_cast %96 : vector<16xf32> to vector<16x1xf32>
      %98 = tpu.reciprocal %97 : vector<16x1xf32> -> vector<16x1xf32>
      %99 = vector.broadcast %98 : vector<16x1xf32> to vector<16x128xf32>
      %100 = arith.mulf %95, %99 : vector<16x128xf32>
      %101 = vector.extract_strided_slice %100 {offsets = [0, 0], sizes = [8, 128], strides = [1, 1]} : vector<16x128xf32> to vector<8x128xf32>
      %102 = vector.extract_strided_slice %100 {offsets = [8, 0], sizes = [8, 128], strides = [1, 1]} : vector<16x128xf32> to vector<8x128xf32>
      %103 = arith.addf %101, %102 : vector<8x128xf32>
      %cst_59 = arith.constant 0.000000e+00 : f32
      %104 = vector.broadcast %cst_59 : f32 to vector<8x128xf32>
      %105 = arith.subf %104, %103 : vector<8x128xf32>
      %c0_60 = arith.constant 0 : index
      %c0_61 = arith.constant 0 : index
      %106 = vector.load %arg7[%c0_60, %c0_61] : memref<8x128xf32, #tpu.memory_space<vmem>>, vector<8x128xf32>
      tpu.vector_store %arg7[%c0_60, %c0_61], %105 {strides = array<i32>} : memref<8x128xf32, #tpu.memory_space<vmem>>, vector<8x128xf32>,
    } else {
    }
    %c0 = arith.constant 0 : index
    %c0_1 = arith.constant 0 : index
    %3 = vector.load %arg2[%c0, %c0_1] : memref<32x128xf32, #tpu.memory_space<vmem>>, vector<32x128xf32>
    %cst = arith.constant 1.000000e+01 : f32
    %4 = vector.broadcast %cst : f32 to vector<32x128xf32>
    %5 = arith.mulf %3, %4 : vector<32x128xf32>
    %cst_2 = arith.constant dense<0xFF800000> : vector<32xf32>
    %6 = vector.multi_reduction <maximumf>, %5, %cst_2 [1] : vector<32x128xf32> to vector<32xf32>
    %7 = vector.shape_cast %6 : vector<32xf32> to vector<32x1xf32>
    %8 = vector.broadcast %7 : vector<32x1xf32> to vector<32x128xf32>
    %9 = arith.subf %5, %8 : vector<32x128xf32>
    %10 = math.exp %9 : vector<32x128xf32>
    %cst_3 = arith.constant dense<0.000000e+00> : vector<32xf32>
    %11 = vector.multi_reduction <add>, %10, %cst_3 [1] : vector<32x128xf32> to vector<32xf32>
    %12 = vector.shape_cast %11 : vector<32xf32> to vector<32x1xf32>
    %13 = math.log %12 : vector<32x1xf32>
    %14 = vector.broadcast %13 : vector<32x1xf32> to vector<32x128xf32>
    %15 = arith.subf %9, %14 : vector<32x128xf32>
    %c0_4 = arith.constant 0 : index
    %c0_5 = arith.constant 0 : index
    %16 = vector.load %arg7[%c0_4, %c0_5] : memref<8x128xf32, #tpu.memory_space<vmem>>, vector<8x128xf32>
    %17 = vector.extract_strided_slice %15 {offsets = [0, 0], sizes = [8, 128], strides = [1, 1]} : vector<32x128xf32> to vector<8x128xf32>
    %18 = arith.mulf %16, %17 : vector<8x128xf32>
    %cst_6 = arith.constant dense<0.000000e+00> : vector<8xf32>
    %19 = vector.multi_reduction <add>, %18, %cst_6 [1] : vector<8x128xf32> to vector<8xf32>
    %20 = vector.shape_cast %19 : vector<8xf32> to vector<8x1xf32>
    %cst_7 = arith.constant dense<0.000000e+00> : vector<1xf32>
    %21 = vector.multi_reduction <add>, %20, %cst_7 [0] : vector<8x1xf32> to vector<1xf32>
    %22 = vector.shape_cast %21 : vector<1xf32> to vector<1x1xf32>
    %cst_8 = arith.constant 1.250000e-01 : f32
    %23 = vector.broadcast %cst_8 : f32 to vector<1x1xf32>
    %24 = arith.mulf %22, %23 : vector<1x1xf32>
    %c0_9 = arith.constant 0 : index
    %c0_10 = arith.constant 0 : index
    %25 = vector.load %arg8[%c0_9, %c0_10] : memref<1x1xf32, #tpu.memory_space<vmem>>, vector<1x1xf32>
    %26 = arith.addf %25, %24 : vector<1x1xf32>
    %c0_11 = arith.constant 0 : index
    %c0_12 = arith.constant 0 : index
    %27 = vector.load %arg8[%c0_11, %c0_12] : memref<1x1xf32, #tpu.memory_space<vmem>>, vector<1x1xf32>
    tpu.vector_store %arg8[%c0_11, %c0_12], %26 {strides = array<i32>} : memref<1x1xf32, #tpu.memory_space<vmem>>, vector<1x1xf32>,
    %c0_i32_13 = arith.constant 0 : i32
    %28 = arith.cmpi eq, %arg0, %c0_i32_13 : i32
    %29 = arith.extui %28 : i1 to i32
    %c0_i32_14 = arith.constant 0 : i32
    %30 = arith.cmpi ne, %29, %c0_i32_14 : i32
    scf.if %30 {
      %c0_40 = arith.constant 0 : index
      %70 = memref.load %arg1[%c0_40] : memref<1xf32, #tpu.memory_space<smem>>
      %cst_41 = arith.constant 1.000000e+00 : f32
      %71 = arith.divf %cst_41, %70 : f32
      %c0_42 = arith.constant 0 : index
      %c0_43 = arith.constant 0 : index
      %72 = vector.load %arg3[%c0_42, %c0_43] : memref<16x128xf32, #tpu.memory_space<vmem>>, vector<8x128xf32>
      %c0_44 = arith.constant 0 : index
      %c0_45 = arith.constant 0 : index
      %73 = vector.load %arg4[%c0_44, %c0_45] : memref<1x128xf32, #tpu.memory_space<vmem>>, vector<1x128xf32>
      %74 = vector.broadcast %73 : vector<1x128xf32> to vector<8x128xf32>
      %75 = arith.subf %72, %74 : vector<8x128xf32>
      %76 = vector.broadcast %71 : f32 to vector<8x128xf32>
      %77 = arith.mulf %75, %76 : vector<8x128xf32>
      %cst_46 = arith.constant dense<0xFF800000> : vector<8xf32>
      %78 = vector.multi_reduction <maximumf>, %77, %cst_46 [1] : vector<8x128xf32> to vector<8xf32>
      %79 = vector.shape_cast %78 : vector<8xf32> to vector<8x1xf32>
      %80 = vector.broadcast %79 : vector<8x1xf32> to vector<8x128xf32>
      %81 = arith.subf %77, %80 : vector<8x128xf32>
      %82 = math.exp %81 : vector<8x128xf32>
      %cst_47 = arith.constant dense<0.000000e+00> : vector<8xf32>
      %83 = vector.multi_reduction <add>, %82, %cst_47 [1] : vector<8x128xf32> to vector<8xf32>
      %84 = vector.shape_cast %83 : vector<8xf32> to vector<8x1xf32>
      %85 = tpu.reciprocal %84 : vector<8x1xf32> -> vector<8x1xf32>
      %86 = vector.broadcast %85 : vector<8x1xf32> to vector<8x128xf32>
      %87 = arith.mulf %82, %86 : vector<8x128xf32>
      %88 = arith.mulf %87, %17 : vector<8x128xf32>
      %cst_48 = arith.constant dense<0.000000e+00> : vector<8xf32>
      %89 = vector.multi_reduction <add>, %88, %cst_48 [1] : vector<8x128xf32> to vector<8xf32>
      %90 = vector.shape_cast %89 : vector<8xf32> to vector<8x1xf32>
      %cst_49 = arith.constant dense<0.000000e+00> : vector<1xf32>
      %91 = vector.multi_reduction <add>, %90, %cst_49 [0] : vector<8x1xf32> to vector<1xf32>
      %92 = vector.shape_cast %91 : vector<1xf32> to vector<1x1xf32>
      %cst_50 = arith.constant 1.250000e-01 : f32
      %93 = vector.broadcast %cst_50 : f32 to vector<1x1xf32>
      %94 = arith.mulf %92, %93 : vector<1x1xf32>
      %c0_51 = arith.constant 0 : index
      %c0_52 = arith.constant 0 : index
      %95 = vector.load %arg8[%c0_51, %c0_52] : memref<1x1xf32, #tpu.memory_space<vmem>>, vector<1x1xf32>
      %96 = arith.addf %95, %94 : vector<1x1xf32>
      %c0_53 = arith.constant 0 : index
      %c0_54 = arith.constant 0 : index
      %97 = vector.load %arg8[%c0_53, %c0_54] : memref<1x1xf32, #tpu.memory_space<vmem>>, vector<1x1xf32>
      tpu.vector_store %arg8[%c0_53, %c0_54], %96 {strides = array<i32>} : memref<1x1xf32, #tpu.memory_space<vmem>>, vector<1x1xf32>,
    } else {
    }
    %31 = vector.extract_strided_slice %15 {offsets = [8, 0], sizes = [8, 128], strides = [1, 1]} : vector<32x128xf32> to vector<8x128xf32>
    %32 = arith.mulf %16, %31 : vector<8x128xf32>
    %cst_15 = arith.constant dense<0.000000e+00> : vector<8xf32>
    %33 = vector.multi_reduction <add>, %32, %cst_15 [1] : vector<8x128xf32> to vector<8xf32>
    %34 = vector.shape_cast %33 : vector<8xf32> to vector<8x1xf32>
    %cst_16 = arith.constant dense<0.000000e+00> : vector<1xf32>
    %35 = vector.multi_reduction <add>, %34, %cst_16 [0] : vector<8x1xf32> to vector<1xf32>
    %36 = vector.shape_cast %35 : vector<1xf32> to vector<1x1xf32>
    %cst_17 = arith.constant 1.250000e-01 : f32
    %37 = vector.broadcast %cst_17 : f32 to vector<1x1xf32>
    %38 = arith.mulf %36, %37 : vector<1x1xf32>
    %c0_18 = arith.constant 0 : index
    %c0_19 = arith.constant 0 : index
    %39 = vector.load %arg8[%c0_18, %c0_19] : memref<1x1xf32, #tpu.memory_space<vmem>>, vector<1x1xf32>
    %40 = arith.addf %39, %38 : vector<1x1xf32>
    %c0_20 = arith.constant 0 : index
    %c0_21 = arith.constant 0 : index
    %41 = vector.load %arg8[%c0_20, %c0_21] : memref<1x1xf32, #tpu.memory_space<vmem>>, vector<1x1xf32>
    tpu.vector_store %arg8[%c0_20, %c0_21], %40 {strides = array<i32>} : memref<1x1xf32, #tpu.memory_space<vmem>>, vector<1x1xf32>,
    %c0_i32_22 = arith.constant 0 : i32
    %42 = arith.cmpi eq, %arg0, %c0_i32_22 : i32
    %43 = arith.extui %42 : i1 to i32
    %c0_i32_23 = arith.constant 0 : i32
    %44 = arith.cmpi ne, %43, %c0_i32_23 : i32
    scf.if %44 {
      %c0_40 = arith.constant 0 : index
      %70 = memref.load %arg1[%c0_40] : memref<1xf32, #tpu.memory_space<smem>>
      %cst_41 = arith.constant 1.000000e+00 : f32
      %71 = arith.divf %cst_41, %70 : f32
      %c8 = arith.constant 8 : index
      %c0_42 = arith.constant 0 : index
      %72 = vector.load %arg3[%c8, %c0_42] : memref<16x128xf32, #tpu.memory_space<vmem>>, vector<8x128xf32>
      %c0_43 = arith.constant 0 : index
      %c0_44 = arith.constant 0 : index
      %73 = vector.load %arg4[%c0_43, %c0_44] : memref<1x128xf32, #tpu.memory_space<vmem>>, vector<1x128xf32>
      %74 = vector.broadcast %73 : vector<1x128xf32> to vector<8x128xf32>
      %75 = arith.subf %72, %74 : vector<8x128xf32>
      %76 = vector.broadcast %71 : f32 to vector<8x128xf32>
      %77 = arith.mulf %75, %76 : vector<8x128xf32>
      %cst_45 = arith.constant dense<0xFF800000> : vector<8xf32>
      %78 = vector.multi_reduction <maximumf>, %77, %cst_45 [1] : vector<8x128xf32> to vector<8xf32>
      %79 = vector.shape_cast %78 : vector<8xf32> to vector<8x1xf32>
      %80 = vector.broadcast %79 : vector<8x1xf32> to vector<8x128xf32>
      %81 = arith.subf %77, %80 : vector<8x128xf32>
      %82 = math.exp %81 : vector<8x128xf32>
      %cst_46 = arith.constant dense<0.000000e+00> : vector<8xf32>
      %83 = vector.multi_reduction <add>, %82, %cst_46 [1] : vector<8x128xf32> to vector<8xf32>
      %84 = vector.shape_cast %83 : vector<8xf32> to vector<8x1xf32>
      %85 = tpu.reciprocal %84 : vector<8x1xf32> -> vector<8x1xf32>
      %86 = vector.broadcast %85 : vector<8x1xf32> to vector<8x128xf32>
      %87 = arith.mulf %82, %86 : vector<8x128xf32>
      %88 = arith.mulf %87, %31 : vector<8x128xf32>
      %cst_47 = arith.constant dense<0.000000e+00> : vector<8xf32>
      %89 = vector.multi_reduction <add>, %88, %cst_47 [1] : vector<8x128xf32> to vector<8xf32>
      %90 = vector.shape_cast %89 : vector<8xf32> to vector<8x1xf32>
      %cst_48 = arith.constant dense<0.000000e+00> : vector<1xf32>
      %91 = vector.multi_reduction <add>, %90, %cst_48 [0] : vector<8x1xf32> to vector<1xf32>
      %92 = vector.shape_cast %91 : vector<1xf32> to vector<1x1xf32>
      %cst_49 = arith.constant 1.250000e-01 : f32
      %93 = vector.broadcast %cst_49 : f32 to vector<1x1xf32>
      %94 = arith.mulf %92, %93 : vector<1x1xf32>
      %c0_50 = arith.constant 0 : index
      %c0_51 = arith.constant 0 : index
      %95 = vector.load %arg8[%c0_50, %c0_51] : memref<1x1xf32, #tpu.memory_space<vmem>>, vector<1x1xf32>
      %96 = arith.addf %95, %94 : vector<1x1xf32>
      %c0_52 = arith.constant 0 : index
      %c0_53 = arith.constant 0 : index
      %97 = vector.load %arg8[%c0_52, %c0_53] : memref<1x1xf32, #tpu.memory_space<vmem>>, vector<1x1xf32>
      tpu.vector_store %arg8[%c0_52, %c0_53], %96 {strides = array<i32>} : memref<1x1xf32, #tpu.memory_space<vmem>>, vector<1x1xf32>,
    } else {
    }
    %45 = vector.extract_strided_slice %15 {offsets = [16, 0], sizes = [8, 128], strides = [1, 1]} : vector<32x128xf32> to vector<8x128xf32>
    %46 = arith.mulf %16, %45 : vector<8x128xf32>
    %cst_24 = arith.constant dense<0.000000e+00> : vector<8xf32>
    %47 = vector.multi_reduction <add>, %46, %cst_24 [1] : vector<8x128xf32> to vector<8xf32>
    %48 = vector.shape_cast %47 : vector<8xf32> to vector<8x1xf32>
    %cst_25 = arith.constant dense<0.000000e+00> : vector<1xf32>
    %49 = vector.multi_reduction <add>, %48, %cst_25 [0] : vector<8x1xf32> to vector<1xf32>
    %50 = vector.shape_cast %49 : vector<1xf32> to vector<1x1xf32>
    %cst_26 = arith.constant 1.250000e-01 : f32
    %51 = vector.broadcast %cst_26 : f32 to vector<1x1xf32>
    %52 = arith.mulf %50, %51 : vector<1x1xf32>
    %c0_27 = arith.constant 0 : index
    %c0_28 = arith.constant 0 : index
    %53 = vector.load %arg8[%c0_27, %c0_28] : memref<1x1xf32, #tpu.memory_space<vmem>>, vector<1x1xf32>
    %54 = arith.addf %53, %52 : vector<1x1xf32>
    %c0_29 = arith.constant 0 : index
    %c0_30 = arith.constant 0 : index
    %55 = vector.load %arg8[%c0_29, %c0_30] : memref<1x1xf32, #tpu.memory_space<vmem>>, vector<1x1xf32>
    tpu.vector_store %arg8[%c0_29, %c0_30], %54 {strides = array<i32>} : memref<1x1xf32, #tpu.memory_space<vmem>>, vector<1x1xf32>,
    %56 = vector.extract_strided_slice %15 {offsets = [24, 0], sizes = [8, 128], strides = [1, 1]} : vector<32x128xf32> to vector<8x128xf32>
    %57 = arith.mulf %16, %56 : vector<8x128xf32>
    %cst_31 = arith.constant dense<0.000000e+00> : vector<8xf32>
    %58 = vector.multi_reduction <add>, %57, %cst_31 [1] : vector<8x128xf32> to vector<8xf32>
    %59 = vector.shape_cast %58 : vector<8xf32> to vector<8x1xf32>
    %cst_32 = arith.constant dense<0.000000e+00> : vector<1xf32>
    %60 = vector.multi_reduction <add>, %59, %cst_32 [0] : vector<8x1xf32> to vector<1xf32>
    %61 = vector.shape_cast %60 : vector<1xf32> to vector<1x1xf32>
    %cst_33 = arith.constant 1.250000e-01 : f32
    %62 = vector.broadcast %cst_33 : f32 to vector<1x1xf32>
    %63 = arith.mulf %61, %62 : vector<1x1xf32>
    %c0_34 = arith.constant 0 : index
    %c0_35 = arith.constant 0 : index
    %64 = vector.load %arg8[%c0_34, %c0_35] : memref<1x1xf32, #tpu.memory_space<vmem>>, vector<1x1xf32>
    %65 = arith.addf %64, %63 : vector<1x1xf32>
    %c0_36 = arith.constant 0 : index
    %c0_37 = arith.constant 0 : index
    %66 = vector.load %arg8[%c0_36, %c0_37] : memref<1x1xf32, #tpu.memory_space<vmem>>, vector<1x1xf32>
    tpu.vector_store %arg8[%c0_36, %c0_37], %65 {strides = array<i32>} : memref<1x1xf32, #tpu.memory_space<vmem>>, vector<1x1xf32>,
    %c0_i32_38 = arith.constant 0 : i32
    %67 = arith.cmpi eq, %arg0, %c0_i32_38 : i32
    %68 = arith.extui %67 : i1 to i32
    %c0_i32_39 = arith.constant 0 : i32
    %69 = arith.cmpi ne, %68, %c0_i32_39 : i32
    scf.if %69 {
      %c0_40 = arith.constant 0 : index
      %c0_41 = arith.constant 0 : index
      %70 = vector.load %arg8[%c0_40, %c0_41] : memref<1x1xf32, #tpu.memory_space<vmem>>, vector<1x1xf32>
      %cst_42 = arith.constant 0.166666672 : f32
      %71 = vector.broadcast %cst_42 : f32 to vector<1x1xf32>
      %72 = arith.mulf %70, %71 : vector<1x1xf32>
      %c0_43 = arith.constant 0 : index
      %c0_44 = arith.constant 0 : index
      %73 = vector.load %arg5[%c0_43, %c0_44] : memref<1x1xf32, #tpu.memory_space<vmem>>, vector<1x1xf32>
      tpu.vector_store %arg5[%c0_43, %c0_44], %72 {strides = array<i32>} : memref<1x1xf32, #tpu.memory_space<vmem>>, vector<1x1xf32>,
    } else {
    }
    return
  }
  func.func @transform_0(%arg0: i32, %arg1: memref<1xf32, #tpu.memory_space<smem>>) -> (i32, i32) {
    %c0_i32 = arith.constant 0 : i32
    %c0_i32_0 = arith.constant 0 : i32
    return %arg0, %c0_i32 : i32, i32
  }
  func.func @transform_1(%arg0: i32, %arg1: memref<1xf32, #tpu.memory_space<smem>>) -> (i32, i32) {
    %c0_i32 = arith.constant 0 : i32
    %c0_i32_0 = arith.constant 0 : i32
    %c0_i32_1 = arith.constant 0 : i32
    return %c0_i32, %c0_i32_0 : i32, i32
  }
  func.func @transform_2(%arg0: i32, %arg1: memref<1xf32, #tpu.memory_space<smem>>) -> (i32, i32) {
    %c0_i32 = arith.constant 0 : i32
    %c0_i32_0 = arith.constant 0 : i32
    %c0_i32_1 = arith.constant 0 : i32
    return %c0_i32, %c0_i32_0 : i32, i32
  }
  func.func @transform_3(%arg0: i32, %arg1: memref<1xf32, #tpu.memory_space<smem>>) -> (i32, i32) {
    %c0_i32 = arith.constant 0 : i32
    %c0_i32_0 = arith.constant 0 : i32
    %c0_i32_1 = arith.constant 0 : i32
    return %c0_i32, %c0_i32_0 : i32, i32
  }
  func.func @transform_4(%arg0: i32, %arg1: memref<1xf32, #tpu.memory_space<smem>>) -> (i32, i32) {
    %c0_i32 = arith.constant 0 : i32
    %c0_i32_0 = arith.constant 0 : i32
    %c0_i32_1 = arith.constant 0 : i32
    return %c0_i32, %c0_i32_0 : i32, i32
  }
}

</mosaic_0001>

<llo_original>
// kernel: tpu_custom_call.1
$region0: #{tpu_custom_call.1}
  #allocation0 [shape = 'u32[]', space=smem, size = 0x4, offset = 0x4, fixed_abs, tag = 'smem constant byte address 0x4 - core index']
  #allocation1 [shape = 'u32[72,128]{1,0:T(1,128)}', space=vmem, size = 0x9000, scoped, tag = 'internal scratch']
  #allocation2 [shape = 'f32[8,128]{1,0:T(8,128)}', space=vmem, size = 0x1000, scoped, tag = 'scratch operand']
  #allocation3 [shape = 'f32[1,1]{1,0:T(1,128)}', space=vmem, size = 0x200, scoped, tag = 'scratch operand']
  #allocation4 [shape = 's32[1]{0}', space=sflag, size = 0x4, scoped, tag = 'scoped memory for tpu_custom_call.1']
  #allocation5 [shape = 'f32[1]{0:T(128)S(6)}', space=smem, size = 0x200, scoped, tag = 'prefetched SMEM operand 0']
  %s0 = inlined_call_operand.<no memory space> [shape: f32[1], index: 0, kind: input, shape index: {}]
  %s1 = inlined_call_operand.hbm [shape: f32[32,128], index: 1, kind: input, shape index: {}]
  %s2 = inlined_call_operand.hbm [shape: f32[16,128], index: 2, kind: input, shape index: {}]
  %s3 = inlined_call_operand.vmem [shape: f32[1,128], index: 3, kind: input, shape index: {}]
  %s4 = inlined_call_operand.hbm [shape: f32[1,1], index: 4, kind: output, shape index: {0}]
  %s5 = inlined_call_operand.hbm [shape: f32[1,128], index: 5, kind: output, shape index: {1}]
  %6 = xla_tuple %s4, %s5
  %s7 = sld [smem:[#allocation0]]
  $region54: #{tpu_custom_call.1} parent=0
    _
  %s9 = ssub.s32 1, %s7
  %s10 = scalar_select 0, %s9, %s7
  %11 = sst [smem:[#allocation5]] %s0
  $region1: #{tpu_custom_call.1} parent=0
    #allocation6 [shape = 'u8[16384]{0}', space=vmem, size = 0x4000, scoped, tag = 'input window, operand 1, single buffered']
    #allocation7 [shape = 's32[1]{0}', space=sflag, size = 0x4, scoped, tag = 'scoped memory for tpu_custom_call.1']
    #allocation8 [shape = 's32[1]{0}', space=sflag, size = 0x4, scoped, tag = 'scoped memory for tpu_custom_call.1']
    #allocation9 [shape = 'u8[8192]{0}', space=vmem, size = 0x2000, scoped, tag = 'input window, operand 2, single buffered']
    #allocation10 [shape = 's32[1]{0}', space=sflag, size = 0x4, scoped, tag = 'scoped memory for tpu_custom_call.1']
    #allocation11 [shape = 'u8[512]{0}', space=vmem, size = 0x400, scoped, tag = 'output window, operand 0, single buffered']
    #allocation12 [shape = 'u8[512]{0}', space=vmem, size = 0x400, scoped, tag = 'output window, operand 1, single buffered']
    #allocation13 [shape = 's32[1]{0}', space=sflag, size = 0x4, scoped, tag = 'scoped memory for tpu_custom_call.1']
    %12 = vsyncpa [#allocation7], 0
    %13 = vsyncpa [#allocation10], 0
    %14 = vsyncpa [#allocation8], 0
    %15 = vsyncpa [#allocation13], 0
    // Predicated region
    $region2: #{tpu_custom_call.1} parent=1 // pred_check
      _
    $region3: #{tpu_custom_call.1} parent=1 // pred_check_branch
      %17 = sbr.rel (0) target = $region5
    $region4: #{tpu_custom_call.1} parent=1 // pred_region
      %19 = vsyncadd [#allocation7], 0
      %s20 = sshll.u32 %s1, 4
      %s21 = int_to_ptr.hbm [resolvable:$true] %s20
      %s22 = sshll.u32 [#allocation6], 4
      %s23 = int_to_ptr.vmem [resolvable:$true] %s22
      %28 = dma.hbm_to_vmem [thread:$0]  %s21, 512, %s23, [#allocation7], 128, 128, 8
    $region5: #{tpu_custom_call.1} parent=1 // pred_fallthru
      _
    // Predicated region
    $region6: #{tpu_custom_call.1} parent=1 // pred_check
      _
    $region7: #{tpu_custom_call.1} parent=1 // pred_check_branch
      %30 = sbr.rel (0) target = $region9
    $region8: #{tpu_custom_call.1} parent=1 // pred_region
      %32 = vsyncadd [#allocation10], 0
      %s33 = sshll.u32 %s2, 4
      %s34 = int_to_ptr.hbm [resolvable:$true] %s33
      %s35 = sshll.u32 [#allocation9], 4
      %s36 = int_to_ptr.vmem [resolvable:$true] %s35
      %41 = dma.hbm_to_vmem [thread:$0]  %s34, 256, %s36, [#allocation10], 128, 128, 8
    $region9: #{tpu_custom_call.1} parent=1 // pred_fallthru
      _
    // Predicated region
    $region10: #{tpu_custom_call.1} parent=1 // pred_check
      _
    $region11: #{tpu_custom_call.1} parent=1 // pred_check_branch
      %43 = sbr.rel (0) target = $region13
    $region12: #{tpu_custom_call.1} parent=1 // pred_region
      _
    $region13: #{tpu_custom_call.1} parent=1 // pred_fallthru
      _
    // Predicated region
    $region14: #{tpu_custom_call.1} parent=1 // pred_check
      _
    $region15: #{tpu_custom_call.1} parent=1 // pred_check_branch
      %45 = sbr.rel (0) target = $region17
    $region16: #{tpu_custom_call.1} parent=1 // pred_region
      %47 = dma.done [#allocation7], 512
    $region17: #{tpu_custom_call.1} parent=1 // pred_fallthru
      _
    // Predicated region
    $region18: #{tpu_custom_call.1} parent=1 // pred_check
      _
    $region19: #{tpu_custom_call.1} parent=1 // pred_check_branch
      %49 = sbr.rel (0) target = $region21
    $region20: #{tpu_custom_call.1} parent=1 // pred_region
      %51 = dma.done [#allocation10], 256
    $region21: #{tpu_custom_call.1} parent=1 // pred_fallthru
      _
    %p52 = scmp.eq.s32.totalorder 0, 0
    // Predicated region
    $region22: #{tpu_custom_call.1} parent=1 // pred_check
      %p53 = pneg %p52
    $region23: #{tpu_custom_call.1} parent=1 // pred_check_branch
      %55 = sbr.rel (%p53) target = $region25
    $region24: #{tpu_custom_call.1} parent=1 // pred_region
      %vm56 = vcmask 0
      %57 = vst.msk [vmem:[#allocation3] sm:$0x1] %vm56, 0.0
      %v58 = vld [vmem:[#allocation9] sm:$0xff]
      %v59 = vld [vmem:[#allocation9 + $0x8] sm:$0xff]
      %v60 = vadd.f32 %v58, %v59
      %v61 = vrot.slane %v60, 4
      %v62 = vadd.f32 %v60, %v61
      %v63 = vrot.slane %v62, 2
      %v64 = vadd.f32 %v62, %v63
      %v65 = vrot.slane %v64, 1
      %v66 = vadd.f32 %v64, %v65
      %v67 = vmul.f32 %v66, 0.0625
      %v68 = vld [vmem:[%s3] sm:$0x1]
      %v69 = vmul.f32 %v68, 0.9
      %v70 = vmul.f32 %v67, 0.1
      %v71 = vadd.f32 %v69, %v70
      %72 = vst [vmem:[#allocation12] sm:$0x1] %v71
      %s73 = sld [smem:[#allocation5]]
      %v74 = vstv %s73
      %v75 = vrcp.pop %v74
      %v76 = vmul.f32 %v74, %v75
      %v77 = vsub.f32 1.0, %v76
      %v78 = vmul.f32 %v75, %v77
      %v79 = vadd.f32 %v75, %v78
      %vm80 = vweird.f32 %v74
      %vm81 = vweird.f32 %v75
      %vm82 = vmor %vm80, %vm81
      %v83 = vsel %vm82, %v75, %v79
      %v84 = vand.u32 2147483647, %v74
      %vm85 = vcmp.eq.f32.partialorder %v84, 8.507059e+37
      %v86 = vand.u32 %v74, 2147483648
      %v87 = vor.u32 1.1754944e-38, %v86
      %v88 = vsel %vm85, %v87, %v83
      %s89 = vtos %v88
      %v90 = vld [vmem:[%s3] sm:$0x1]
      %v92 = vperm.slane %v90, 0
      %v94 = vsub.f32 %v58, %v92
      %v95 = vsub.f32 %v59, %v92
      %v96 = vstv %s89
      %v97 = vmul.f32 %v94, %v96
      %v98 = vmul.f32 %v95, %v96
      %99 = vmax.xlane.f32.xlu0 %v97
      %v100 = vpop.xlane.xlu0 %99
      %101 = vmax.xlane.f32.xlu0 %v98
      %v102 = vpop.xlane.xlu0 %101
      %v103 = vsub.f32 %v97, %v100
      %v104 = vsub.f32 %v98, %v102
      %v105 = vmul.f32 %v103, 1.442695
      %v106 = vpow.pop %v105
      %v107 = vmul.f32 %v104, 1.442695
      %v108 = vpow.pop %v107
      %109 = vadd.xlane.f32.xlu0 %v106
      %v110 = vpop.xlane.xlu0 %109
      %111 = vadd.xlane.f32.xlu0 %v108
      %v112 = vpop.xlane.xlu0 %111
      %v113 = vrcp.pop %v110
      %v114 = vmul.f32 %v110, %v113
      %v115 = vsub.f32 1.0, %v114
      %v116 = vmul.f32 %v113, %v115
      %v117 = vadd.f32 %v113, %v116
      %vm118 = vweird.f32 %v110
      %vm119 = vweird.f32 %v113
      %vm120 = vmor %vm118, %vm119
      %v121 = vsel %vm120, %v113, %v117
      %v122 = vand.u32 2147483647, %v110
      %vm123 = vcmp.eq.f32.partialorder %v122, 8.507059e+37
      %v124 = vand.u32 %v110, 2147483648
      %v125 = vor.u32 1.1754944e-38, %v124
      %v126 = vsel %vm123, %v125, %v121
      %v127 = vrcp.pop %v112
      %v128 = vmul.f32 %v112, %v127
      %v129 = vsub.f32 1.0, %v128
      %v130 = vmul.f32 %v127, %v129
      %v131 = vadd.f32 %v127, %v130
      %vm132 = vweird.f32 %v112
      %vm133 = vweird.f32 %v127
      %vm134 = vmor %vm132, %vm133
      %v135 = vsel %vm134, %v127, %v131
      %v136 = vand.u32 2147483647, %v112
      %vm137 = vcmp.eq.f32.partialorder %v136, 8.507059e+37
      %v138 = vand.u32 %v112, 2147483648
      %v139 = vor.u32 1.1754944e-38, %v138
      %v140 = vsel %vm137, %v139, %v135
      %v141 = vmul.f32 %v106, %v126
      %v142 = vmul.f32 %v108, %v140
      %v143 = vadd.f32 %v141, %v142
      %v144 = vsub.f32 0.0, %v143
      %145 = vst [vmem:[#allocation2] sm:$0xff] %v144
    $region25: #{tpu_custom_call.1} parent=1 // pred_fallthru
      _
    %v146 = vld [vmem:[#allocation6] sm:$0xff]
    %v147 = vld [vmem:[#allocation6 + $0x8] sm:$0xff]
    %v148 = vld [vmem:[#allocation6 + $0x10] sm:$0xff]
    %v149 = vld [vmem:[#allocation6 + $0x18] sm:$0xff]
    %v150 = vmul.f32 %v146, 10.0
    %v151 = vmul.f32 %v147, 10.0
    %v152 = vmul.f32 %v148, 10.0
    %v153 = vmul.f32 %v149, 10.0
    %154 = vmax.xlane.f32.xlu0 %v150
    %v155 = vpop.xlane.xlu0 %154
    %156 = vmax.xlane.f32.xlu0 %v151
    %v157 = vpop.xlane.xlu0 %156
    %158 = vmax.xlane.f32.xlu0 %v152
    %v159 = vpop.xlane.xlu0 %158
    %160 = vmax.xlane.f32.xlu0 %v153
    %v161 = vpop.xlane.xlu0 %160
    %v162 = vsub.f32 %v150, %v155
    %v163 = vsub.f32 %v151, %v157
    %v164 = vsub.f32 %v152, %v159
    %v165 = vsub.f32 %v153, %v161
    %v166 = vmul.f32 %v162, 1.442695
    %v167 = vpow.pop %v166
    %v168 = vmul.f32 %v163, 1.442695
    %v169 = vpow.pop %v168
    %v170 = vmul.f32 %v164, 1.442695
    %v171 = vpow.pop %v170
    %v172 = vmul.f32 %v165, 1.442695
    %v173 = vpow.pop %v172
    %174 = vadd.xlane.f32.xlu0 %v167
    %v175 = vpop.xlane.xlu0 %174
    %176 = vadd.xlane.f32.xlu0 %v169
    %v177 = vpop.xlane.xlu0 %176
    %178 = vadd.xlane.f32.xlu0 %v171
    %v179 = vpop.xlane.xlu0 %178
    %180 = vadd.xlane.f32.xlu0 %v173
    %v181 = vpop.xlane.xlu0 %180
    %v182 = vlog2.pop %v175
    %v183 = vmul.f32 %v182, 0.6931472
    %v184 = vlog2.pop %v177
    %v185 = vmul.f32 %v184, 0.6931472
    %v186 = vlog2.pop %v179
    %v187 = vmul.f32 %v186, 0.6931472
    %v188 = vlog2.pop %v181
    %v189 = vmul.f32 %v188, 0.6931472
    %v190 = vsub.f32 %v162, %v183
    %v191 = vsub.f32 %v163, %v185
    %v192 = vsub.f32 %v164, %v187
    %v193 = vsub.f32 %v165, %v189
    %v194 = vld [vmem:[#allocation2] sm:$0xff]
    %v195 = vmul.f32 %v194, %v190
    %196 = vadd.xlane.f32.xlu0 %v195
    %v197 = vpop.xlane.xlu0 %196
    %v198 = vrot.slane %v197, 4
    %v199 = vadd.f32 %v197, %v198
    %v200 = vrot.slane %v199, 2
    %v201 = vadd.f32 %v199, %v200
    %v202 = vrot.slane %v201, 1
    %v203 = vadd.f32 %v201, %v202
    %v204 = vmul.f32 %v203, 0.125
    %v205 = vld [vmem:[#allocation3] sm:$0x1]
    %v206 = vadd.f32 %v205, %v204
    %vm207 = vcmask 0
    %208 = vst.msk [vmem:[#allocation3] sm:$0x1] %vm207, %v206
    // Predicated region
    $region26: #{tpu_custom_call.1} parent=1 // pred_check
      %p209 = pneg %p52
    $region27: #{tpu_custom_call.1} parent=1 // pred_check_branch
      %211 = sbr.rel (%p209) target = $region29
    $region28: #{tpu_custom_call.1} parent=1 // pred_region
      %s212 = sld [smem:[#allocation5]]
      %v213 = vstv %s212
      %v214 = vrcp.pop %v213
      %v215 = vmul.f32 %v213, %v214
      %v216 = vsub.f32 1.0, %v215
      %v217 = vmul.f32 %v214, %v216
      %v218 = vadd.f32 %v214, %v217
      %vm219 = vweird.f32 %v213
      %vm220 = vweird.f32 %v214
      %vm221 = vmor %vm219, %vm220
      %v222 = vsel %vm221, %v214, %v218
      %v223 = vand.u32 2147483647, %v213
      %vm224 = vcmp.eq.f32.partialorder %v223, 8.507059e+37
      %v225 = vand.u32 %v213, 2147483648
      %v226 = vor.u32 1.1754944e-38, %v225
      %v227 = vsel %vm224, %v226, %v222
      %s228 = vtos %v227
      %v229 = vld [vmem:[#allocation9] sm:$0xff]
      %v230 = vld [vmem:[%s3] sm:$0x1]
      %v232 = vperm.slane %v230, 0
      %v234 = vsub.f32 %v229, %v232
      %v235 = vstv %s228
      %v236 = vmul.f32 %v234, %v235
      %237 = vmax.xlane.f32.xlu0 %v236
      %v238 = vpop.xlane.xlu0 %237
      %v239 = vsub.f32 %v236, %v238
      %v240 = vmul.f32 %v239, 1.442695
      %v241 = vpow.pop %v240
      %242 = vadd.xlane.f32.xlu0 %v241
      %v243 = vpop.xlane.xlu0 %242
      %v244 = vrcp.pop %v243
      %v245 = vmul.f32 %v243, %v244
      %v246 = vsub.f32 1.0, %v245
      %v247 = vmul.f32 %v244, %v246
      %v248 = vadd.f32 %v244, %v247
      %vm249 = vweird.f32 %v243
      %vm250 = vweird.f32 %v244
      %vm251 = vmor %vm249, %vm250
      %v252 = vsel %vm251, %v244, %v248
      %v253 = vand.u32 2147483647, %v243
      %vm254 = vcmp.eq.f32.partialorder %v253, 8.507059e+37
      %v255 = vand.u32 %v243, 2147483648
      %v256 = vor.u32 1.1754944e-38, %v255
      %v257 = vsel %vm254, %v256, %v252
      %v258 = vmul.f32 %v241, %v257
      %v259 = vmul.f32 %v258, %v190
      %260 = vadd.xlane.f32.xlu0 %v259
      %v261 = vpop.xlane.xlu0 %260
      %v262 = vrot.slane %v261, 4
      %v263 = vadd.f32 %v261, %v262
      %v264 = vrot.slane %v263, 2
      %v265 = vadd.f32 %v263, %v264
      %v266 = vrot.slane %v265, 1
      %v267 = vadd.f32 %v265, %v266
      %v268 = vmul.f32 %v267, 0.125
      %v269 = vld [vmem:[#allocation3] sm:$0x1]
      %v270 = vadd.f32 %v269, %v268
      %271 = vst.msk [vmem:[#allocation3] sm:$0x1] %vm207, %v270
    $region29: #{tpu_custom_call.1} parent=1 // pred_fallthru
      _
    %v272 = vmul.f32 %v194, %v191
    %273 = vadd.xlane.f32.xlu0 %v272
    %v274 = vpop.xlane.xlu0 %273
    %v275 = vrot.slane %v274, 4
    %v276 = vadd.f32 %v274, %v275
    %v277 = vrot.slane %v276, 2
    %v278 = vadd.f32 %v276, %v277
    %v279 = vrot.slane %v278, 1
    %v280 = vadd.f32 %v278, %v279
    %v281 = vmul.f32 %v280, 0.125
    %v282 = vld [vmem:[#allocation3] sm:$0x1]
    %v283 = vadd.f32 %v282, %v281
    %284 = vst.msk [vmem:[#allocation3] sm:$0x1] %vm207, %v283
    // Predicated region
    $region30: #{tpu_custom_call.1} parent=1 // pred_check
      %p285 = pneg %p52
    $region31: #{tpu_custom_call.1} parent=1 // pred_check_branch
      %287 = sbr.rel (%p285) target = $region33
    $region32: #{tpu_custom_call.1} parent=1 // pred_region
      %s288 = sld [smem:[#allocation5]]
      %v289 = vstv %s288
      %v290 = vrcp.pop %v289
      %v291 = vmul.f32 %v289, %v290
      %v292 = vsub.f32 1.0, %v291
      %v293 = vmul.f32 %v290, %v292
      %v294 = vadd.f32 %v290, %v293
      %vm295 = vweird.f32 %v289
      %vm296 = vweird.f32 %v290
      %vm297 = vmor %vm295, %vm296
      %v298 = vsel %vm297, %v290, %v294
      %v299 = vand.u32 2147483647, %v289
      %vm300 = vcmp.eq.f32.partialorder %v299, 8.507059e+37
      %v301 = vand.u32 %v289, 2147483648
      %v302 = vor.u32 1.1754944e-38, %v301
      %v303 = vsel %vm300, %v302, %v298
      %s304 = vtos %v303
      %v305 = vld [vmem:[#allocation9 + $0x8] sm:$0xff]
      %v306 = vld [vmem:[%s3] sm:$0x1]
      %v308 = vperm.slane %v306, 0
      %v310 = vsub.f32 %v305, %v308
      %v311 = vstv %s304
      %v312 = vmul.f32 %v310, %v311
      %313 = vmax.xlane.f32.xlu0 %v312
      %v314 = vpop.xlane.xlu0 %313
      %v315 = vsub.f32 %v312, %v314
      %v316 = vmul.f32 %v315, 1.442695
      %v317 = vpow.pop %v316
      %318 = vadd.xlane.f32.xlu0 %v317
      %v319 = vpop.xlane.xlu0 %318
      %v320 = vrcp.pop %v319
      %v321 = vmul.f32 %v319, %v320
      %v322 = vsub.f32 1.0, %v321
      %v323 = vmul.f32 %v320, %v322
      %v324 = vadd.f32 %v320, %v323
      %vm325 = vweird.f32 %v319
      %vm326 = vweird.f32 %v320
      %vm327 = vmor %vm325, %vm326
      %v328 = vsel %vm327, %v320, %v324
      %v329 = vand.u32 2147483647, %v319
      %vm330 = vcmp.eq.f32.partialorder %v329, 8.507059e+37
      %v331 = vand.u32 %v319, 2147483648
      %v332 = vor.u32 1.1754944e-38, %v331
      %v333 = vsel %vm330, %v332, %v328
      %v334 = vmul.f32 %v317, %v333
      %v335 = vmul.f32 %v334, %v191
      %336 = vadd.xlane.f32.xlu0 %v335
      %v337 = vpop.xlane.xlu0 %336
      %v338 = vrot.slane %v337, 4
      %v339 = vadd.f32 %v337, %v338
      %v340 = vrot.slane %v339, 2
      %v341 = vadd.f32 %v339, %v340
      %v342 = vrot.slane %v341, 1
      %v343 = vadd.f32 %v341, %v342
      %v344 = vmul.f32 %v343, 0.125
      %v345 = vld [vmem:[#allocation3] sm:$0x1]
      %v346 = vadd.f32 %v345, %v344
      %347 = vst.msk [vmem:[#allocation3] sm:$0x1] %vm207, %v346
    $region33: #{tpu_custom_call.1} parent=1 // pred_fallthru
      _
    %v348 = vmul.f32 %v194, %v192
    %349 = vadd.xlane.f32.xlu0 %v348
    %v350 = vpop.xlane.xlu0 %349
    %v351 = vrot.slane %v350, 4
    %v352 = vadd.f32 %v350, %v351
    %v353 = vrot.slane %v352, 2
    %v354 = vadd.f32 %v352, %v353
    %v355 = vrot.slane %v354, 1
    %v356 = vadd.f32 %v354, %v355
    %v357 = vmul.f32 %v356, 0.125
    %v358 = vld [vmem:[#allocation3] sm:$0x1]
    %v359 = vadd.f32 %v358, %v357
    %360 = vst.msk [vmem:[#allocation3] sm:$0x1] %vm207, %v359
    %v361 = vmul.f32 %v194, %v193
    %362 = vadd.xlane.f32.xlu0 %v361
    %v363 = vpop.xlane.xlu0 %362
    %v364 = vrot.slane %v363, 4
    %v365 = vadd.f32 %v363, %v364
    %v366 = vrot.slane %v365, 2
    %v367 = vadd.f32 %v365, %v366
    %v368 = vrot.slane %v367, 1
    %v369 = vadd.f32 %v367, %v368
    %v370 = vmul.f32 %v369, 0.125
    %v371 = vld [vmem:[#allocation3] sm:$0x1]
    %v372 = vadd.f32 %v371, %v370
    %373 = vst.msk [vmem:[#allocation3] sm:$0x1] %vm207, %v372
    // Predicated region
    $region34: #{tpu_custom_call.1} parent=1 // pred_check
      %p374 = pneg %p52
    $region35: #{tpu_custom_call.1} parent=1 // pred_check_branch
      %376 = sbr.rel (%p374) target = $region37
    $region36: #{tpu_custom_call.1} parent=1 // pred_region
      %v377 = vld [vmem:[#allocation3] sm:$0x1]
      %v378 = vmul.f32 %v377, 0.16666667
      %379 = vst.msk [vmem:[#allocation11] sm:$0x1] %vm207, %v378
    $region37: #{tpu_custom_call.1} parent=1 // pred_fallthru
      _
    // Predicated region
    $region38: #{tpu_custom_call.1} parent=1 // pred_check
      _
    $region39: #{tpu_custom_call.1} parent=1 // pred_check_branch
      %381 = sbr.rel (0) target = $region41
    $region40: #{tpu_custom_call.1} parent=1 // pred_region
      %383 = vsyncadd [#allocation8], 0
      %s385 = sshll.u32 [#allocation11], 4
      %s386 = int_to_ptr.vmem [resolvable:$true] %s385
      %s387 = sshll.u32 %s4, 4
      %s388 = int_to_ptr.hbm [resolvable:$true] %s387
      %390 = dma.vmem_to_hbm [thread:$0]  %s386, 16, %s388, [#allocation8]
    $region41: #{tpu_custom_call.1} parent=1 // pred_fallthru
      _
    // Predicated region
    $region42: #{tpu_custom_call.1} parent=1 // pred_check
      _
    $region43: #{tpu_custom_call.1} parent=1 // pred_check_branch
      %392 = sbr.rel (0) target = $region45
    $region44: #{tpu_custom_call.1} parent=1 // pred_region
      %394 = vsyncadd [#allocation13], 0
      %s396 = sshll.u32 [#allocation12], 4
      %s397 = int_to_ptr.vmem [resolvable:$true] %s396
      %s398 = sshll.u32 %s5, 4
      %s399 = int_to_ptr.hbm [resolvable:$true] %s398
      %401 = dma.vmem_to_hbm [thread:$0]  %s397, 16, %s399, [#allocation13]
    $region45: #{tpu_custom_call.1} parent=1 // pred_fallthru
      _
    // Predicated region
    $region46: #{tpu_custom_call.1} parent=1 // pred_check
      _
    $region47: #{tpu_custom_call.1} parent=1 // pred_check_branch
      %403 = sbr.rel (0) target = $region49
    $region48: #{tpu_custom_call.1} parent=1 // pred_region
      %405 = dma.done [#allocation8], 16
    $region49: #{tpu_custom_call.1} parent=1 // pred_fallthru
      _
    // Predicated region
    $region50: #{tpu_custom_call.1} parent=1 // pred_check
      _
    $region51: #{tpu_custom_call.1} parent=1 // pred_check_branch
      %407 = sbr.rel (0) target = $region53
    $region52: #{tpu_custom_call.1} parent=1 // pred_region
      %409 = dma.done [#allocation13], 16
    $region53: #{tpu_custom_call.1} parent=1 // pred_fallthru
      _
    %410 = vsyncpa [#allocation7], 1
    %411 = vsyncpa [#allocation10], 1
    %412 = vsyncpa [#allocation8], 1
    %413 = vsyncpa [#allocation13], 1

</llo_original>
